<compile_context>
chip_gen: v7x
topology: tpu7x:2x2x1
jax: 0.10.0
libtpu: 0.0.40
codegen_flags: <defaults>
</compile_context>

<pallas_src>
import functools

import jax
import jax.numpy as jnp
from jax.experimental import pallas as pl
from jax.experimental.pallas import tpu as pltpu


def _concat_slice_kernel(x1_ref, x2_ref, o_ref, *, k):
    """Writes [x1 | x2 | v1[:, :k]] into the output tile.

    x1_ref: (TB, D1), x2_ref: (TB, D2), o_ref: (TB, D1 + D2 + k).
    All slice bounds are Python ints (static), so stores stay lane-aligned
    whenever the split points are multiples of 128.
    """
    d1 = x1_ref.shape[-1]
    d2 = x2_ref.shape[-1]

    # Load each input tile once; reuse the values for both destinations.
    x1v = x1_ref[...]
    x2v = x2_ref[...]

    # v1 = cat([x1, x2], dim=1) — written directly into the output slab.
    o_ref[:, 0:d1] = x1v
    o_ref[:, d1:d1 + d2] = x2v

    # v3 = v1[:, :k]; appended after v1 (re-uses the already-loaded values,
    # no re-read of the output or of VMEM).
    base = d1 + d2
    if k <= d1:
        o_ref[:, base:base + k] = x1v[:, 0:k]
    else:
        o_ref[:, base:base + d1] = x1v
        o_ref[:, base + d1:base + k] = x2v[:, 0:k - d1]


def _sublane(itemsize):
    return {4: 8, 2: 16, 1: 32}.get(itemsize, 8)


def _pick_batch_tile(b, d1, d2, d_out, itemsize, requested=None):
    """Sublane-aligned batch tile sized from a conservative VMEM budget.

    Returns a tile that (a) keeps the double-buffered x1+x2+out rows under
    ~24 MiB, (b) is a multiple of the sublane count, and (c) yields >= 2 grid
    tiles whenever B permits (pipelining depth + v7x megacore sharding).
    Used with a cdiv grid, so B does NOT need to be divisible by the tile.
    """
    sub = _sublane(itemsize)

    if requested is None:
        # Double-buffered inputs + output per row of a tile; ~24 MiB working
        # set (explicit vmem_limit_bytes below makes this fit on v5e too).
        vmem_budget = 24 << 20
        per_row = (d1 + d2 + d_out) * itemsize * 2
        requested = max(sub, (vmem_budget // per_row) // sub * sub)
        requested = min(requested, 512)  # amortize ~0.35us/step; diminishing past ~512

    if b <= sub:
        return b  # single full-extent block (legal block shape)

    tb = max(sub, (min(requested, b) // sub) * sub)

    if b >= 2 * sub:
        # Guarantee at least 2 tiles so the pipeline has depth > 1 and both
        # v7x TensorCores get work; harmless on single-TC v5e/v6e.
        tb = min(tb, max(sub, (b // 2) // sub * sub))

    return tb


def model_forward(x1, x2, x3, x4, *, batch_tile=None):
    """Pallas implementation of Model.forward(x1, x2); x3/x4 only supply sizes."""
    assert x1.ndim == 2 and x2.ndim == 2
    b, d1 = x1.shape
    b2, d2 = x2.shape
    assert b == b2, (b, b2)
    assert x1.dtype == x2.dtype

    k = x3.shape[1] + x4.shape[1]          # static slice length for v3
    k = min(k, d1 + d2)                    # slicing never exceeds v1 width
    d_out = d1 + d2 + k

    itemsize = jnp.dtype(x1.dtype).itemsize
    tb = _pick_batch_tile(b, d1, d2, d_out, itemsize, requested=batch_tile)
    grid = (pl.cdiv(b, tb),)               # partial tail block is masked by Pallas

    # Explicit scoped-VMEM limit from the actual double-buffered footprint,
    # with headroom; capped at 48 MiB (safe on v7x's 64 MiB physical VMEM,
    # well within v5e/v6e's 128 MiB, and overrides v5e's 16 MiB default).
    working_set = 2 * tb * (d1 + d2 + d_out) * itemsize
    vmem_limit = int(min(48 << 20, max(16 << 20, working_set + (8 << 20))))

    kernel = functools.partial(_concat_slice_kernel, k=k)

    return pl.pallas_call(
        kernel,
        out_shape=jax.ShapeDtypeStruct((b, d_out), x1.dtype),
        grid_spec=pltpu.PrefetchScalarGridSpec(
            num_scalar_prefetch=0,
            grid=grid,
            in_specs=[
                pl.BlockSpec((tb, d1), lambda i: (i, 0)),
                pl.BlockSpec((tb, d2), lambda i: (i, 0)),
            ],
            out_specs=pl.BlockSpec((tb, d_out), lambda i: (i, 0)),
        ),
        compiler_params=pltpu.CompilerParams(
            # Independent batch tiles: shard across both TCs on v7x megacore.
            dimension_semantics=("parallel",),
            vmem_limit_bytes=vmem_limit,
        ),
    )(x1, x2)


if __name__ == "__main__":
    key = jax.random.PRNGKey(0)
    k1, k2, k3, k4 = jax.random.split(key, 4)

    # Small shapes consistent with the module (original: 1x2048/2048/1024/1024).
    # B=16 with an explicit batch_tile=8 exercises the pipelined multi-tile path.
    B, D1, D2, D3, D4 = 16, 256, 256, 128, 128
    x1 = jax.random.normal(k1, (B, D1), dtype=jnp.float32)
    x2 = jax.random.normal(k2, (B, D2), dtype=jnp.float32)
    x3 = jax.random.normal(k3, (B, D3), dtype=jnp.float32)
    x4 = jax.random.normal(k4, (B, D4), dtype=jnp.float32)

    # Pure-JAX reference of the PyTorch semantics.
    v1 = jnp.concatenate([x1, x2], axis=1)
    v3 = v1[:, 0:(D3 + D4)]
    ref = jnp.concatenate([v1, v3], axis=1)

    # Explicit tile (2 pipelined tiles).
    out = jax.block_until_ready(model_forward(x1, x2, x3, x4, batch_tile=8))
    assert out.shape == ref.shape, (out.shape, ref.shape)
    assert jnp.allclose(out, ref), "mismatch vs reference (explicit tile)"

    # Auto tile (picks >=2 tiles for B=16 as well).
    out2 = jax.block_until_ready(model_forward(x1, x2, x3, x4))
    assert jnp.allclose(out2, ref), "mismatch vs reference (auto tile)"

    # Non-divisible batch exercises the cdiv grid / masked tail block.
    xb1, xb2 = x1[:12], x2[:12]
    out3 = jax.block_until_ready(model_forward(xb1, xb2, x3, x4, batch_tile=8))
    assert jnp.allclose(out3, ref[:12]), "mismatch vs reference (tail block)"

    print("KERNEL_OK")
</pallas_src>

<mosaic_0001>
module attributes {stable_mosaic.version = 11 : i64} {
  func.func @_concat_slice_kernel(%arg0: i32, %arg1: memref<8x256xf32, #tpu.memory_space<vmem>>, %arg2: memref<8x256xf32, #tpu.memory_space<vmem>>, %arg3: memref<8x768xf32, #tpu.memory_space<vmem>>) attributes {dimension_semantics = [#tpu.dimension_semantics<parallel>], iteration_bounds = array<i64: 2>, scalar_prefetch = 0 : i64, scratch_operands = 0 : i64, tpu.core_type = #tpu.core_type<tc>, window_params = [{transform_indices = @transform_0, window_bounds = array<i64: 8, 256>}, {transform_indices = @transform_1, window_bounds = array<i64: 8, 256>}, {transform_indices = @transform_2, window_bounds = array<i64: 8, 768>}]} {
    %c0 = arith.constant 0 : index
    %c0_0 = arith.constant 0 : index
    %0 = vector.load %arg1[%c0, %c0_0] : memref<8x256xf32, #tpu.memory_space<vmem>>, vector<8x256xf32>
    %c0_1 = arith.constant 0 : index
    %c0_2 = arith.constant 0 : index
    %1 = vector.load %arg2[%c0_1, %c0_2] : memref<8x256xf32, #tpu.memory_space<vmem>>, vector<8x256xf32>
    %c0_3 = arith.constant 0 : index
    %c0_4 = arith.constant 0 : index
    %2 = vector.load %arg3[%c0_3, %c0_4] : memref<8x768xf32, #tpu.memory_space<vmem>>, vector<8x256xf32>
    tpu.vector_store %arg3[%c0_3, %c0_4], %0 {strides = array<i32>} : memref<8x768xf32, #tpu.memory_space<vmem>>, vector<8x256xf32>,
    %c0_5 = arith.constant 0 : index
    %c256 = arith.constant 256 : index
    %3 = vector.load %arg3[%c0_5, %c256] : memref<8x768xf32, #tpu.memory_space<vmem>>, vector<8x256xf32>
    tpu.vector_store %arg3[%c0_5, %c256], %1 {strides = array<i32>} : memref<8x768xf32, #tpu.memory_space<vmem>>, vector<8x256xf32>,
    %c0_6 = arith.constant 0 : index
    %c512 = arith.constant 512 : index
    %4 = vector.load %arg3[%c0_6, %c512] : memref<8x768xf32, #tpu.memory_space<vmem>>, vector<8x256xf32>
    tpu.vector_store %arg3[%c0_6, %c512], %0 {strides = array<i32>} : memref<8x768xf32, #tpu.memory_space<vmem>>, vector<8x256xf32>,
    return
  }
  func.func @transform_0(%arg0: i32) -> (i32, i32) {
    %c0_i32 = arith.constant 0 : i32
    %c0_i32_0 = arith.constant 0 : i32
    return %arg0, %c0_i32 : i32, i32
  }
  func.func @transform_1(%arg0: i32) -> (i32, i32) {
    %c0_i32 = arith.constant 0 : i32
    %c0_i32_0 = arith.constant 0 : i32
    return %arg0, %c0_i32 : i32, i32
  }
  func.func @transform_2(%arg0: i32) -> (i32, i32) {
    %c0_i32 = arith.constant 0 : i32
    %c0_i32_0 = arith.constant 0 : i32
    return %arg0, %c0_i32 : i32, i32
  }
}

</mosaic_0001>

<llo_original>
// kernel: tpu_custom_call.1
$region0: #{tpu_custom_call.1}
  #allocation0 [shape = 'u32[]', space=smem, size = 0x4, offset = 0x4, fixed_abs, tag = 'smem constant byte address 0x4 - core index']
  #allocation1 [shape = 'u32[144,128]{1,0:T(1,128)}', space=vmem, size = 0x12000, scoped, tag = 'internal scratch']
  %s0 = inlined_call_operand.hbm [shape: f32[16,256], index: 0, kind: input, shape index: {}]
  %s1 = inlined_call_operand.hbm [shape: f32[16,256], index: 1, kind: input, shape index: {}]
  %s2 = inlined_call_operand.hbm [shape: f32[16,768], index: 2, kind: output, shape index: {}]
  %s3 = sld [smem:[#allocation0]]
  $region49: #{tpu_custom_call.1} parent=0
    _
  %s5 = ssub.s32 1, %s3
  %s6 = scalar_select 0, %s5, %s3
  $region1: #{tpu_custom_call.1} parent=0
    #allocation2 [shape = 'u8[16384]{0}', space=vmem, size = 0x4000, scoped, tag = 'input window, operand 0']
    #allocation3 [shape = 's32[2]{0}', space=sflag, size = 0x8, scoped, tag = 'scoped memory for tpu_custom_call.1']
    #allocation4 [shape = 's32[2]{0}', space=sflag, size = 0x8, scoped, tag = 'scoped memory for tpu_custom_call.1']
    #allocation5 [shape = 'u8[16384]{0}', space=vmem, size = 0x4000, scoped, tag = 'input window, operand 1']
    #allocation6 [shape = 's32[2]{0}', space=sflag, size = 0x8, scoped, tag = 'scoped memory for tpu_custom_call.1']
    #allocation7 [shape = 'u8[49152]{0}', space=vmem, size = 0xc000, scoped, tag = 'output window, operand 0']
    %7 = vsyncpa [#allocation3], 0
    %s8 = scalar_lea.sflag [#allocation3], 1
    %9 = vsyncpa %s8, 0
    %10 = vsyncpa [#allocation6], 0
    %s11 = scalar_lea.sflag [#allocation6], 1
    %12 = vsyncpa %s11, 0
    %13 = vsyncpa [#allocation4], 0
    %s14 = scalar_lea.sflag [#allocation4], 1
    %15 = vsyncpa %s14, 0
    loop: start=0, step=1, limit=4
    $region2: #{tpu_custom_call.1} parent=1 // loop_pre_header
      _
    $region3: #{tpu_custom_call.1} parent=1 // loop_header
      %s17 = sphi 0, %s21
      %p18 = scmp.ge.s32.totalorder %s17, 4
      %s27 = sphi 0, %s29
      %s30 = sphi 0, %s27
      %s31 = sphi 0, %s30
      %s47 = sphi 0, %s31
      %s53 = sphi 0, %s55
      %s56 = sphi 0, %s53
      %s57 = sphi 0, %s56
      %s73 = sphi 0, %s57
      %s79 = sphi 0, %s81
      %s82 = sphi 0, %s79
      %s83 = sphi 0, %s82
      %s99 = sphi 0, %s83
    $region4: #{tpu_custom_call.1} parent=1 // loop_header_branch
      %20 = sbr.rel (%p18) target = $region8
    $region5: #{tpu_custom_call.1} parent=1 // loop_body
      %s22 = ssub.s32 %s17, 1
      %s23 = ssub.s32 %s17, 2
      %s24 = sadd.s32 %s17, 1
      %s25 = ssub.s32 %s17, %s24
      %p26 = scmp.eq.s32.totalorder %s25, 0
      %s28 = sadd.s32 %s27, 1
      %s29 = scalar_select %p26, %s27, %s28
      %p32 = pneg %p26
      %p33 = scmp.eq.s32.totalorder %s17, 1
      %p34 = por %p32, %p33
      %p35 = scmp.ne.s32.totalorder %s27, %s30
      %p36 = scmp.eq.s32.totalorder %s17, 0
      %p37 = por %p35, %p36
      %p38 = scmp.ne.s32.totalorder %s27, %s30
      %p39 = scmp.eq.s32.totalorder %s22, 1
      %p40 = por %p38, %p39
      %p41 = scmp.ne.s32.totalorder %s30, %s31
      %p42 = scmp.eq.s32.totalorder %s22, 0
      %p43 = por %p41, %p42
      %p44 = scmp.ne.s32.totalorder %s30, %s31
      %p45 = scmp.eq.s32.totalorder %s23, 1
      %p46 = por %p44, %p45
      %p48 = scmp.ne.s32.totalorder %s31, %s47
      %p49 = scmp.eq.s32.totalorder %s23, 0
      %p50 = por %p48, %p49
      %s51 = ssub.s32 %s17, %s24
      %p52 = scmp.eq.s32.totalorder %s51, 0
      %s54 = sadd.s32 %s53, 1
      %s55 = scalar_select %p52, %s53, %s54
      %p58 = pneg %p52
      %p59 = scmp.eq.s32.totalorder %s17, 1
      %p60 = por %p58, %p59
      %p61 = scmp.ne.s32.totalorder %s53, %s56
      %p62 = scmp.eq.s32.totalorder %s17, 0
      %p63 = por %p61, %p62
      %p64 = scmp.ne.s32.totalorder %s53, %s56
      %p65 = scmp.eq.s32.totalorder %s22, 1
      %p66 = por %p64, %p65
      %p67 = scmp.ne.s32.totalorder %s56, %s57
      %p68 = scmp.eq.s32.totalorder %s22, 0
      %p69 = por %p67, %p68
      %p70 = scmp.ne.s32.totalorder %s56, %s57
      %p71 = scmp.eq.s32.totalorder %s23, 1
      %p72 = por %p70, %p71
      %p74 = scmp.ne.s32.totalorder %s57, %s73
      %p75 = scmp.eq.s32.totalorder %s23, 0
      %p76 = por %p74, %p75
      %s77 = ssub.s32 %s17, %s24
      %p78 = scmp.eq.s32.totalorder %s77, 0
      %s80 = sadd.s32 %s79, 1
      %s81 = scalar_select %p78, %s79, %s80
      %p84 = pneg %p78
      %p85 = scmp.eq.s32.totalorder %s17, 1
      %p86 = por %p84, %p85
      %p87 = scmp.ne.s32.totalorder %s79, %s82
      %p88 = scmp.eq.s32.totalorder %s17, 0
      %p89 = por %p87, %p88
      %p90 = scmp.ne.s32.totalorder %s79, %s82
      %p91 = scmp.eq.s32.totalorder %s22, 1
      %p92 = por %p90, %p91
      %p93 = scmp.ne.s32.totalorder %s82, %s83
      %p94 = scmp.eq.s32.totalorder %s22, 0
      %p95 = por %p93, %p94
      %p96 = scmp.ne.s32.totalorder %s82, %s83
      %p97 = scmp.eq.s32.totalorder %s23, 1
      %p98 = por %p96, %p97
      %p100 = scmp.ne.s32.totalorder %s83, %s99
      %p101 = scmp.eq.s32.totalorder %s23, 0
      %p102 = por %p100, %p101
      %p103 = scmp.le.s32.totalorder 1, %s17
      %p104 = scmp.lt.s32.totalorder %s17, 3
      %p105 = pnand %p103, %p104
      %p106 = pneg %p105
      // Predicated region
      $region9: #{tpu_custom_call.1} parent=5 // pred_check
        _
      $region10: #{tpu_custom_call.1} parent=5 // pred_check_branch
        %108 = sbr.rel (%p105) target = $region12
      $region11: #{tpu_custom_call.1} parent=5 // pred_region
        %s109 = ssub.s32 %s17, 1
      $region12: #{tpu_custom_call.1} parent=5 // pred_fallthru
        _
      %p110 = scmp.lt.s32.totalorder %s17, 2
      // Predicated region
      $region13: #{tpu_custom_call.1} parent=5 // pred_check
        %p111 = pneg %p110
      $region14: #{tpu_custom_call.1} parent=5 // pred_check_branch
        %113 = sbr.rel (%p111) target = $region16
      $region15: #{tpu_custom_call.1} parent=5 // pred_region
        // Predicated region
        $region17: #{tpu_custom_call.1} parent=15 // pred_check
          %p114 = pneg %p37
        $region18: #{tpu_custom_call.1} parent=15 // pred_check_branch
          %116 = sbr.rel (%p114) target = $region20
        $region19: #{tpu_custom_call.1} parent=15 // pred_region
          %s117 = sand.u32 %s27, 1
          %s118 = scalar_lea.sflag [#allocation3], %s117
          %s119 = sand.u32 %s27, 1
          %s120 = smul.addr %s119, 16
          %s121 = scalar_lea.vmem [#allocation2], %s120
          %s123 = ssub.s32 256, 256
          %124 = vsyncadd %s118, %s123
          %s125 = smul.addr %s17, 2
          %s126 = smul.addr %s125, 128
          %s127 = scalar_lea.hbm %s0, %s126
          %s129 = sshll.u32 %s121, 4
          %s130 = int_to_ptr.vmem [resolvable:$true] %s129
          %132 = dma.hbm_to_vmem [thread:$0]  %s127, 256, %s130, %s118
        $region20: #{tpu_custom_call.1} parent=15 // pred_fallthru
          _
        // Predicated region
        $region21: #{tpu_custom_call.1} parent=15 // pred_check
          %p133 = pneg %p63
        $region22: #{tpu_custom_call.1} parent=15 // pred_check_branch
          %135 = sbr.rel (%p133) target = $region24
        $region23: #{tpu_custom_call.1} parent=15 // pred_region
          %s136 = sand.u32 %s53, 1
          %s137 = scalar_lea.sflag [#allocation6], %s136
          %s138 = sand.u32 %s53, 1
          %s139 = smul.addr %s138, 16
          %s140 = scalar_lea.vmem [#allocation5], %s139
          %s142 = ssub.s32 256, 256
          %143 = vsyncadd %s137, %s142
          %s144 = smul.addr %s17, 2
          %s145 = smul.addr %s144, 128
          %s146 = scalar_lea.hbm %s1, %s145
          %s148 = sshll.u32 %s140, 4
          %s149 = int_to_ptr.vmem [resolvable:$true] %s148
          %151 = dma.hbm_to_vmem [thread:$0]  %s146, 256, %s149, %s137
        $region24: #{tpu_custom_call.1} parent=15 // pred_fallthru
          _
      $region16: #{tpu_custom_call.1} parent=5 // pred_fallthru
        _
      %p152 = scmp.le.s32.totalorder 1, %s17
      %p153 = scmp.lt.s32.totalorder %s17, 3
      %p154 = pnand %p152, %p153
      %p155 = pneg %p154
      // Predicated region
      $region25: #{tpu_custom_call.1} parent=5 // pred_check
        _
      $region26: #{tpu_custom_call.1} parent=5 // pred_check_branch
        %157 = sbr.rel (%p154) target = $region28
      $region27: #{tpu_custom_call.1} parent=5 // pred_region
        %s158 = ssub.s32 %s17, 1
        %s159 = sand.u32 %s30, 1
        %s160 = scalar_lea.sflag [#allocation3], %s159
        %s161 = sand.u32 %s30, 1
        %s162 = smul.addr %s161, 16
        %s163 = scalar_lea.vmem [#allocation2], %s162
        // Predicated region
        $region29: #{tpu_custom_call.1} parent=27 // pred_check
          %p164 = pneg %p43
        $region30: #{tpu_custom_call.1} parent=27 // pred_check_branch
          %166 = sbr.rel (%p164) target = $region32
        $region31: #{tpu_custom_call.1} parent=27 // pred_region
          %167 = dma.done %s160, 256
        $region32: #{tpu_custom_call.1} parent=27 // pred_fallthru
          _
        %s168 = sand.u32 %s56, 1
        %s169 = scalar_lea.sflag [#allocation6], %s168
        %s170 = sand.u32 %s56, 1
        %s171 = smul.addr %s170, 16
        %s172 = scalar_lea.vmem [#allocation5], %s171
        // Predicated region
        $region33: #{tpu_custom_call.1} parent=27 // pred_check
          %p173 = pneg %p69
        $region34: #{tpu_custom_call.1} parent=27 // pred_check_branch
          %175 = sbr.rel (%p173) target = $region36
        $region35: #{tpu_custom_call.1} parent=27 // pred_region
          %176 = dma.done %s169, 256
        $region36: #{tpu_custom_call.1} parent=27 // pred_fallthru
          _
        %s177 = sand.u32 %s30, 1
        %s178 = scalar_lea.sflag [#allocation3], %s177
        %s179 = sand.u32 %s30, 1
        %s180 = smul.addr %s179, 16
        %s181 = scalar_lea.vmem [#allocation2], %s180
        %p182 = pneg %p43
        %p183 = pneg %p40
        %s184 = sand.u32 %s56, 1
        %s185 = scalar_lea.sflag [#allocation6], %s184
        %s186 = sand.u32 %s56, 1
        %s187 = smul.addr %s186, 16
        %s188 = scalar_lea.vmem [#allocation5], %s187
        %p189 = pneg %p69
        %p190 = pneg %p66
        %p191 = pneg %p95
        %p192 = pneg %p92
        %s193 = sand.u32 %s82, 1
        %s194 = scalar_lea.sflag [#allocation4], %s193
        %s195 = sand.u32 %s82, 1
        %s196 = smul.addr %s195, 48
        %s197 = scalar_lea.vmem [#allocation7], %s196
        %v198 = vld [vmem:[%s163] sm:$0xff]
        %v199 = vld [vmem:[%s163 + $0x8] sm:$0xff]
        %v200 = vld [vmem:[%s172] sm:$0xff]
        %v201 = vld [vmem:[%s172 + $0x8] sm:$0xff]
        %202 = vst [vmem:[%s197] sm:$0xff] %v198
        %203 = vst [vmem:[%s197 + $0x8] sm:$0xff] %v199
        %204 = vst [vmem:[%s197 + $0x10] sm:$0xff] %v200
        %205 = vst [vmem:[%s197 + $0x18] sm:$0xff] %v201
        %206 = vst [vmem:[%s197 + $0x20] sm:$0xff] %v198
        %207 = vst [vmem:[%s197 + $0x28] sm:$0xff] %v199
        %s208 = sand.u32 %s82, 1
        %s209 = scalar_lea.sflag [#allocation4], %s208
        %s210 = sand.u32 %s82, 1
        %s211 = smul.addr %s210, 48
        %s212 = scalar_lea.vmem [#allocation7], %s211
        // Predicated region
        $region37: #{tpu_custom_call.1} parent=27 // pred_check
          %p213 = pneg %p92
        $region38: #{tpu_custom_call.1} parent=27 // pred_check_branch
          %215 = sbr.rel (%p213) target = $region40
        $region39: #{tpu_custom_call.1} parent=27 // pred_region
          %s217 = ssub.s32 768, 768
          %218 = vsyncadd %s209, %s217
          %s219 = smul.addr %s22, 6
          %s220 = smul.addr %s219, 128
          %s221 = scalar_lea.hbm %s2, %s220
          %s223 = sshll.u32 %s212, 4
          %s224 = int_to_ptr.vmem [resolvable:$true] %s223
          %226 = dma.vmem_to_hbm [thread:$0]  %s224, 768, %s221, %s209
        $region40: #{tpu_custom_call.1} parent=27 // pred_fallthru
          _
      $region28: #{tpu_custom_call.1} parent=5 // pred_fallthru
        _
      %p227 = scmp.le.s32.totalorder 2, %s17
      // Predicated region
      $region41: #{tpu_custom_call.1} parent=5 // pred_check
        %p228 = pneg %p227
      $region42: #{tpu_custom_call.1} parent=5 // pred_check_branch
        %230 = sbr.rel (%p228) target = $region44
      $region43: #{tpu_custom_call.1} parent=5 // pred_region
        %s231 = ssub.s32 %s17, 2
        // Predicated region
        $region45: #{tpu_custom_call.1} parent=43 // pred_check
          %p232 = pneg %p98
        $region46: #{tpu_custom_call.1} parent=43 // pred_check_branch
          %234 = sbr.rel (%p232) target = $region48
        $region47: #{tpu_custom_call.1} parent=43 // pred_region
          %s235 = sand.u32 %s83, 1
          %s236 = scalar_lea.sflag [#allocation4], %s235
          %s237 = sand.u32 %s83, 1
          %s238 = smul.addr %s237, 48
          %s239 = scalar_lea.vmem [#allocation7], %s238
          %240 = dma.done %s236, 768
        $region48: #{tpu_custom_call.1} parent=43 // pred_fallthru
          _
      $region44: #{tpu_custom_call.1} parent=5 // pred_fallthru
        _
    $region6: #{tpu_custom_call.1} parent=1 // loop_footer
      %s21 = sadd.s32 1, %s17
    $region7: #{tpu_custom_call.1} parent=1 // loop_footer_branch
      %16 = sbr.rel target = $region3
    $region8: #{tpu_custom_call.1} parent=1 // loop_exit
      _
    %241 = vsyncpa [#allocation3], 1
    %s242 = scalar_lea.sflag [#allocation3], 1
    %243 = vsyncpa %s242, 1
    %244 = vsyncpa [#allocation6], 1
    %s245 = scalar_lea.sflag [#allocation6], 1
    %246 = vsyncpa %s245, 1
    %247 = vsyncpa [#allocation4], 1
    %s248 = scalar_lea.sflag [#allocation4], 1
    %249 = vsyncpa %s248, 1

</llo_original>
